<compile_context>
chip_gen: v5e
topology: v5e:2x2
jax: 0.10.0
libtpu: 0.0.40
codegen_flags: <defaults>
</compile_context>

<pallas_src>
import functools

import jax
import jax.numpy as jnp
from jax import lax
from jax.experimental import pallas as pl
from jax.experimental.pallas import tpu as pltpu


def _round_up(x, m):
    return ((x + m - 1) // m) * m


# ---------------------------------------------------------------------------
# Kernels
# ---------------------------------------------------------------------------
def _linear_kernel(x_ref, w_ref, b_ref, o_ref):
    # x: (tile_n, Din) f32, w: (Din, Dout) bf16, b: (1, Dout) f32
    y = jnp.dot(x_ref[...].astype(jnp.bfloat16), w_ref[...],
                preferred_element_type=jnp.float32)
    o_ref[...] = (y + b_ref[...]).astype(o_ref.dtype)


def _joint_kernel(enc_ref, pred_ref, w_ref, b_ref, out_ref, *cache_refs,
                  chunk_t, n_chunks, use_cache, unroll):
    # enc : (1, tile_t, J) f32       projected encoder tile
    # pred: (1, u_p, J)    f32       projected predictor (U padded to mult. 16)
    # w   : (J, tile_v)    bf16      ffn_out weight tile (layout (in, out))
    # b   : (1, tile_v)    f32       ffn_out bias tile
    # out : (1, tile_t, U, tile_v)   U is the *unpadded* label length
    # cache (optional): (tile_t, u_p, J) bf16 tanh cache, reused across V tiles
    u_p = pred_ref.shape[1]
    u = out_ref.shape[2]
    tile_v = w_ref.shape[1]
    w = w_ref[...]                         # hoisted: resident for the grid step
    bias = b_ref[...]
    first_v = pl.program_id(2) == 0

    def tanh_chunk(r0):
        enc_c = enc_ref[0, pl.ds(r0, chunk_t), :]                   # (chunk_t, J)
        x = jnp.tanh(enc_c[:, None, :] + pred_ref[0][None, :, :])   # f32 add+tanh
        return x.astype(jnp.bfloat16)                               # (chunk_t,u_p,J)

    def body(c, carry):
        r0 = pl.multiple_of(c * chunk_t, chunk_t)
        if use_cache:
            cache_ref = cache_refs[0]

            @pl.when(first_v)
            def _():
                cache_ref[pl.ds(r0, chunk_t)] = tanh_chunk(r0)

            x = cache_ref[pl.ds(r0, chunk_t)]                       # bf16 reuse
        else:
            x = tanh_chunk(r0)

        y = jnp.dot(x.reshape(chunk_t * u_p, -1), w,
                    preferred_element_type=jnp.float32) + bias      # (chunk*u_p, V)
        y = y.reshape(chunk_t, u_p, tile_v)
        if u != u_p:
            y = y[:, :u, :]                                         # drop U padding
        out_ref[0, pl.ds(r0, chunk_t), :, :] = y.astype(out_ref.dtype)
        return carry

    lax.fori_loop(0, n_chunks, body, 0, unroll=unroll)


# ---------------------------------------------------------------------------
# Wrappers
# ---------------------------------------------------------------------------
def linear_pallas(x2d, w_t, b, *, tile_n=512):
    """x2d: (N, Din) f32, w_t: (Din, Dout), b: (Dout,) -> (N, Dout) f32."""
    n, din = x2d.shape
    dout = w_t.shape[1]
    w_t = w_t.astype(jnp.bfloat16)                 # halves weight DMA, MXU bf16
    if n <= tile_n:
        tile_n = n                                 # full dim -> always legal
    else:
        tile_n = max(8, (min(tile_n, n) // 8) * 8)
    grid_n = pl.cdiv(n, tile_n)                    # partial trailing block OK

    est = (2 * tile_n * din * 4 + 2 * din * dout * 2 + 2 * dout * 4
           + 2 * tile_n * dout * 4)
    vmem_limit = int(min(48 << 20, max(32 << 20, 2 * est)))

    return pl.pallas_call(
        _linear_kernel,
        out_shape=jax.ShapeDtypeStruct((n, dout), x2d.dtype),
        grid=(grid_n,),
        in_specs=[
            pl.BlockSpec((tile_n, din), lambda i: (i, 0)),
            pl.BlockSpec((din, dout), lambda i: (0, 0)),   # resident weight
            pl.BlockSpec((1, dout), lambda i: (0, 0)),     # resident bias
        ],
        out_specs=pl.BlockSpec((tile_n, dout), lambda i: (i, 0)),
        compiler_params=pltpu.CompilerParams(
            dimension_semantics=("parallel",),
            vmem_limit_bytes=vmem_limit,
        ),
    )(x2d, w_t, b.reshape(1, dout))


def joint_pallas(enc_proj, pred_proj, w_out_t, b_out, *, out_dtype=None):
    """enc_proj: (B,T,J) f32, pred_proj: (B,U,J) f32, w_out_t: (J,V), b_out: (V,)."""
    B, T, J = enc_proj.shape
    _, U, _ = pred_proj.shape
    V = w_out_t.shape[1]
    out_dtype = jnp.dtype(out_dtype) if out_dtype is not None else enc_proj.dtype
    itemsize = out_dtype.itemsize
    w_out_t = w_out_t.astype(jnp.bfloat16)

    # Pad only the tiny predictor input so (chunk_t, u_p, J) bf16 flattens
    # cleanly onto the MXU M dim.  The large output is written unpadded.
    u_p = _round_up(U, 16)
    if u_p != U:
        pred_proj = jnp.pad(pred_proj, ((0, 0), (0, u_p - U), (0, 0)))

    # ---- tiling (VMEM-budget driven) ----
    tile_v = V if V <= 512 else 512                 # lane-dense V tiles
    nv = pl.cdiv(V, tile_v)
    use_cache = nv > 1                              # reuse tanh across V tiles

    def _row_bytes(cache):
        r = 2 * U * tile_v * itemsize + 2 * J * 4   # out rows (x2 bufs) + enc (x2)
        if cache:
            r += u_p * J * 2                        # bf16 tanh cache
        return r

    fixed = 2 * J * tile_v * 2 + 2 * tile_v * 4 + 2 * u_p * J * 4
    budget = max((28 << 20) - fixed, 2 << 20)
    tile_t = budget // _row_bytes(use_cache)
    if use_cache and tile_t < 8:
        use_cache = False
        tile_t = budget // _row_bytes(False)
    tile_t = int(max(8, min(tile_t, 512)))
    tile_t = T if tile_t >= T else max(8, (tile_t // 8) * 8)
    nt = pl.cdiv(T, tile_t)

    # v7x megacore: keep >= 2 blocks on the parallel (B, T-tile) axes.
    if B * nt < 2 and T >= 16:
        tile_t = _round_up(pl.cdiv(T, 2), 8)
        nt = pl.cdiv(T, tile_t)

    # Chunk the tanh so the f32 broadcast-add intermediate stays <= ~512 KiB
    # (EUP tanh of chunk i+1 overlaps the MXU matmul of chunk i).
    chunk_t = tile_t
    while chunk_t % 2 == 0 and chunk_t > 4 and chunk_t * u_p * J * 4 > (512 << 10):
        chunk_t //= 2
    n_chunks = tile_t // chunk_t
    unroll = True if n_chunks <= 2 else 2

    scratch = [pltpu.VMEM((tile_t, u_p, J), jnp.bfloat16)] if use_cache else []

    est = (2 * tile_t * J * 4 + 2 * u_p * J * 4 + 2 * J * tile_v * 2
           + 2 * tile_v * 4 + 2 * tile_t * U * tile_v * itemsize
           + (tile_t * u_p * J * 2 if use_cache else 0)
           + 2 * chunk_t * u_p * (J * 6 + tile_v * 4))
    vmem_limit = int(min(48 << 20, max(32 << 20, 2 * est)))   # v7x-safe (<64 MiB)

    cost = pl.CostEstimate(
        flops=int(2 * B * T * U * J * V + 2 * B * T * U * J),
        transcendentals=int(B * T * U * J),
        bytes_accessed=int(B * T * U * V * itemsize           # output stream
                           + B * nt * (J * V * 2 + V * 4)     # W/b reread per (b,ti)
                           + B * T * J * 4 + B * u_p * J * 4),
    )

    kernel = functools.partial(_joint_kernel, chunk_t=chunk_t, n_chunks=n_chunks,
                               use_cache=use_cache, unroll=unroll)

    return pl.pallas_call(
        kernel,
        out_shape=jax.ShapeDtypeStruct((B, T, U, V), out_dtype),
        grid=(B, nt, nv),
        in_specs=[
            pl.BlockSpec((1, tile_t, J), lambda b, ti, vi: (b, ti, 0)),
            pl.BlockSpec((1, u_p, J), lambda b, ti, vi: (b, 0, 0)),
            pl.BlockSpec((J, tile_v), lambda b, ti, vi: (0, vi)),
            pl.BlockSpec((1, tile_v), lambda b, ti, vi: (0, vi)),
        ],
        out_specs=pl.BlockSpec((1, tile_t, U, tile_v),
                               lambda b, ti, vi: (b, ti, 0, vi)),
        scratch_shapes=scratch,
        compiler_params=pltpu.CompilerParams(
            # V tiles must run sequentially on one core (vi==0 fills the tanh
            # cache that later vi reuse) -> "arbitrary" on the innermost axis.
            dimension_semantics=("parallel", "parallel", "arbitrary"),
            vmem_limit_bytes=vmem_limit,
        ),
        cost_estimate=cost,
    )(enc_proj, pred_proj, w_out_t, b_out.reshape(1, V))


@functools.partial(jax.jit, static_argnames=("pre_project", "out_dtype"))
def transducer_joint(enc_out, pred_out, params, pre_project=True, out_dtype=None):
    """Forward pass of TransducerJoint.

    enc_out : (B, T, enc_dim)   (or already (B, T, J) if pre_project=False)
    pred_out: (B, U, pred_dim)  (or already (B, U, J) if pre_project=False)
    returns : (B, T, U, vocab)  in out_dtype (default: input dtype).
    """
    if pre_project:
        B, T, E = enc_out.shape
        _, U, P = pred_out.shape
        J = params["w_enc"].shape[0]
        enc_out = linear_pallas(
            enc_out.reshape(B * T, E), params["w_enc"].T, params["b_enc"]
        ).reshape(B, T, J)
        pred_out = linear_pallas(
            pred_out.reshape(B * U, P), params["w_pred"].T, params["b_pred"]
        ).reshape(B, U, J)
    return joint_pallas(enc_out, pred_out, params["w_out"].T, params["b_out"],
                        out_dtype=out_dtype)


# ---------------------------------------------------------------------------
# Pure-JAX reference (for verification)
# ---------------------------------------------------------------------------
def transducer_joint_ref(enc_out, pred_out, params):
    e = enc_out @ params["w_enc"].T + params["b_enc"]
    q = pred_out @ params["w_pred"].T + params["b_pred"]
    x = jnp.tanh(e[:, :, None, :] + q[:, None, :, :])
    return x @ params["w_out"].T + params["b_out"]


# ---------------------------------------------------------------------------
# Main
# ---------------------------------------------------------------------------
if __name__ == "__main__":
    def make_params(key, enc_dim, pred_dim, join_dim, vocab):
        ks = jax.random.split(key, 6)
        # PyTorch Linear weight layout: (out_features, in_features).
        return {
            "w_enc": jax.random.normal(ks[0], (join_dim, enc_dim), jnp.float32) * 0.05,
            "b_enc": jax.random.normal(ks[1], (join_dim,), jnp.float32) * 0.05,
            "w_pred": jax.random.normal(ks[2], (join_dim, pred_dim), jnp.float32) * 0.05,
            "b_pred": jax.random.normal(ks[3], (join_dim,), jnp.float32) * 0.05,
            "w_out": jax.random.normal(ks[4], (vocab, join_dim), jnp.float32) * 0.05,
            "b_out": jax.random.normal(ks[5], (vocab,), jnp.float32) * 0.05,
        }

    def run_case(key, B, T, U, enc_dim, pred_dim, join_dim, vocab,
                 out_dtype=None, tol=2e-2):
        kp, ke, kq = jax.random.split(key, 3)
        params = make_params(kp, enc_dim, pred_dim, join_dim, vocab)
        enc = jax.random.normal(ke, (B, T, enc_dim), jnp.float32)
        pred = jax.random.normal(kq, (B, U, pred_dim), jnp.float32)
        out = jax.block_until_ready(
            transducer_joint(enc, pred, params, out_dtype=out_dtype))
        ref = transducer_joint_ref(enc, pred, params)
        assert out.shape == (B, T, U, vocab), out.shape
        err = float(jnp.max(jnp.abs(out.astype(jnp.float32) - ref)))
        assert err <= tol, (out.shape, err)

    keys = jax.random.split(jax.random.PRNGKey(0), 4)
    # 1) aligned shapes.
    run_case(keys[0], B=2, T=8, U=8, enc_dim=32, pred_dim=48, join_dim=128, vocab=128)
    # 2) ragged T / U / V (partial trailing blocks + in-kernel U slice).
    run_case(keys[1], B=2, T=24, U=5, enc_dim=32, pred_dim=48, join_dim=128, vocab=200)
    # 3) multiple V tiles (exercises the tanh cache across the vi axis).
    run_case(keys[2], B=2, T=16, U=8, enc_dim=32, pred_dim=48, join_dim=128, vocab=1152)
    # 4) bf16 output path (halves the dominant HBM write stream).
    run_case(keys[3], B=2, T=16, U=16, enc_dim=32, pred_dim=48, join_dim=128,
             vocab=256, out_dtype=jnp.bfloat16, tol=3e-2)

    print("KERNEL_OK")
</pallas_src>

<mosaic_0001>
module attributes {stable_mosaic.version = 11 : i64} {
  func.func @_linear_kernel(%arg0: i32, %arg1: memref<16x32xf32, #tpu.memory_space<vmem>>, %arg2: memref<32x128xbf16, #tpu.memory_space<vmem>>, %arg3: memref<1x128xf32, #tpu.memory_space<vmem>>, %arg4: memref<16x128xf32, #tpu.memory_space<vmem>>) attributes {dimension_semantics = [#tpu.dimension_semantics<parallel>], iteration_bounds = array<i64: 1>, scalar_prefetch = 0 : i64, scratch_operands = 0 : i64, tpu.core_type = #tpu.core_type<tc>, window_params = [{transform_indices = @transform_0, window_bounds = array<i64: 16, 32>}, {pipeline_mode = #tpu.pipeline_mode<synchronous>, transform_indices = @transform_1, window_bounds = array<i64: 32, 128>}, {pipeline_mode = #tpu.pipeline_mode<synchronous>, transform_indices = @transform_2, window_bounds = array<i64: 1, 128>}, {transform_indices = @transform_3, window_bounds = array<i64: 16, 128>}]} {
    %c0 = arith.constant 0 : index
    %c0_0 = arith.constant 0 : index
    %0 = vector.load %arg1[%c0, %c0_0] : memref<16x32xf32, #tpu.memory_space<vmem>>, vector<16x32xf32>
    %1 = arith.truncf %0 : vector<16x32xf32> to vector<16x32xbf16>
    %c0_1 = arith.constant 0 : index
    %c0_2 = arith.constant 0 : index
    %2 = vector.load %arg2[%c0_1, %c0_2] : memref<32x128xbf16, #tpu.memory_space<vmem>>, vector<32x128xbf16>
    %cst = arith.constant dense<0.000000e+00> : vector<16x128xf32>
    %3 = tpu.matmul %1, %2, %cst {dimension_numbers = #tpu.dot_dimension_numbers<[1], [0], [0], [1], [0, 0, 1, 1], [], []>} : vector<16x32xbf16>, vector<32x128xbf16>, vector<16x128xf32> -> vector<16x128xf32>
    %c0_3 = arith.constant 0 : index
    %c0_4 = arith.constant 0 : index
    %4 = vector.load %arg3[%c0_3, %c0_4] : memref<1x128xf32, #tpu.memory_space<vmem>>, vector<1x128xf32>
    %5 = vector.broadcast %4 : vector<1x128xf32> to vector<16x128xf32>
    %6 = arith.addf %3, %5 : vector<16x128xf32>
    %c0_5 = arith.constant 0 : index
    %c0_6 = arith.constant 0 : index
    %7 = vector.load %arg4[%c0_5, %c0_6] : memref<16x128xf32, #tpu.memory_space<vmem>>, vector<16x128xf32>
    tpu.vector_store %arg4[%c0_5, %c0_6], %6 {strides = array<i32>} : memref<16x128xf32, #tpu.memory_space<vmem>>, vector<16x128xf32>,
    return
  }
  func.func @transform_0(%arg0: i32) -> (i32, i32) {
    %c0_i32 = arith.constant 0 : i32
    %c0_i32_0 = arith.constant 0 : i32
    return %arg0, %c0_i32 : i32, i32
  }
  func.func @transform_1(%arg0: i32) -> (i32, i32) {
    %c0_i32 = arith.constant 0 : i32
    %c0_i32_0 = arith.constant 0 : i32
    %c0_i32_1 = arith.constant 0 : i32
    return %c0_i32, %c0_i32_0 : i32, i32
  }
  func.func @transform_2(%arg0: i32) -> (i32, i32) {
    %c0_i32 = arith.constant 0 : i32
    %c0_i32_0 = arith.constant 0 : i32
    %c0_i32_1 = arith.constant 0 : i32
    return %c0_i32, %c0_i32_0 : i32, i32
  }
  func.func @transform_3(%arg0: i32) -> (i32, i32) {
    %c0_i32 = arith.constant 0 : i32
    %c0_i32_0 = arith.constant 0 : i32
    return %arg0, %c0_i32 : i32, i32
  }
}

module attributes {stable_mosaic.version = 11 : i64} {
  func.func @_linear_kernel(%arg0: i32, %arg1: memref<16x48xf32, #tpu.memory_space<vmem>>, %arg2: memref<48x128xbf16, #tpu.memory_space<vmem>>, %arg3: memref<1x128xf32, #tpu.memory_space<vmem>>, %arg4: memref<16x128xf32, #tpu.memory_space<vmem>>) attributes {dimension_semantics = [#tpu.dimension_semantics<parallel>], iteration_bounds = array<i64: 1>, scalar_prefetch = 0 : i64, scratch_operands = 0 : i64, tpu.core_type = #tpu.core_type<tc>, window_params = [{transform_indices = @transform_0, window_bounds = array<i64: 16, 48>}, {pipeline_mode = #tpu.pipeline_mode<synchronous>, transform_indices = @transform_1, window_bounds = array<i64: 48, 128>}, {pipeline_mode = #tpu.pipeline_mode<synchronous>, transform_indices = @transform_2, window_bounds = array<i64: 1, 128>}, {transform_indices = @transform_3, window_bounds = array<i64: 16, 128>}]} {
    %c0 = arith.constant 0 : index
    %c0_0 = arith.constant 0 : index
    %0 = vector.load %arg1[%c0, %c0_0] : memref<16x48xf32, #tpu.memory_space<vmem>>, vector<16x48xf32>
    %1 = arith.truncf %0 : vector<16x48xf32> to vector<16x48xbf16>
    %c0_1 = arith.constant 0 : index
    %c0_2 = arith.constant 0 : index
    %2 = vector.load %arg2[%c0_1, %c0_2] : memref<48x128xbf16, #tpu.memory_space<vmem>>, vector<48x128xbf16>
    %cst = arith.constant dense<0.000000e+00> : vector<16x128xf32>
    %3 = tpu.matmul %1, %2, %cst {dimension_numbers = #tpu.dot_dimension_numbers<[1], [0], [0], [1], [0, 0, 1, 1], [], []>} : vector<16x48xbf16>, vector<48x128xbf16>, vector<16x128xf32> -> vector<16x128xf32>
    %c0_3 = arith.constant 0 : index
    %c0_4 = arith.constant 0 : index
    %4 = vector.load %arg3[%c0_3, %c0_4] : memref<1x128xf32, #tpu.memory_space<vmem>>, vector<1x128xf32>
    %5 = vector.broadcast %4 : vector<1x128xf32> to vector<16x128xf32>
    %6 = arith.addf %3, %5 : vector<16x128xf32>
    %c0_5 = arith.constant 0 : index
    %c0_6 = arith.constant 0 : index
    %7 = vector.load %arg4[%c0_5, %c0_6] : memref<16x128xf32, #tpu.memory_space<vmem>>, vector<16x128xf32>
    tpu.vector_store %arg4[%c0_5, %c0_6], %6 {strides = array<i32>} : memref<16x128xf32, #tpu.memory_space<vmem>>, vector<16x128xf32>,
    return
  }
  func.func @transform_0(%arg0: i32) -> (i32, i32) {
    %c0_i32 = arith.constant 0 : i32
    %c0_i32_0 = arith.constant 0 : i32
    return %arg0, %c0_i32 : i32, i32
  }
  func.func @transform_1(%arg0: i32) -> (i32, i32) {
    %c0_i32 = arith.constant 0 : i32
    %c0_i32_0 = arith.constant 0 : i32
    %c0_i32_1 = arith.constant 0 : i32
    return %c0_i32, %c0_i32_0 : i32, i32
  }
  func.func @transform_2(%arg0: i32) -> (i32, i32) {
    %c0_i32 = arith.constant 0 : i32
    %c0_i32_0 = arith.constant 0 : i32
    %c0_i32_1 = arith.constant 0 : i32
    return %c0_i32, %c0_i32_0 : i32, i32
  }
  func.func @transform_3(%arg0: i32) -> (i32, i32) {
    %c0_i32 = arith.constant 0 : i32
    %c0_i32_0 = arith.constant 0 : i32
    return %arg0, %c0_i32 : i32, i32
  }
}

module attributes {stable_mosaic.version = 11 : i64} {
  func.func @_joint_kernel(%arg0: i32, %arg1: i32, %arg2: i32, %arg3: memref<1x8x128xf32, #tpu.memory_space<vmem>>, %arg4: memref<1x16x128xf32, #tpu.memory_space<vmem>>, %arg5: memref<128x128xbf16, #tpu.memory_space<vmem>>, %arg6: memref<1x128xf32, #tpu.memory_space<vmem>>, %arg7: memref<1x8x8x128xf32, #tpu.memory_space<vmem>>) attributes {dimension_semantics = [#tpu.dimension_semantics<parallel>, #tpu.dimension_semantics<parallel>, #tpu.dimension_semantics<arbitrary>], iteration_bounds = array<i64: 2, 1, 1>, scalar_prefetch = 0 : i64, scratch_operands = 0 : i64, tpu.core_type = #tpu.core_type<tc>, window_params = [{transform_indices = @transform_0, window_bounds = array<i64: 1, 8, 128>}, {transform_indices = @transform_1, window_bounds = array<i64: 1, 16, 128>}, {transform_indices = @transform_2, window_bounds = array<i64: 128, 128>}, {transform_indices = @transform_3, window_bounds = array<i64: 1, 128>}, {transform_indices = @transform_4, window_bounds = array<i64: 1, 8, 8, 128>}]} {
    %c0 = arith.constant 0 : index
    %c0_0 = arith.constant 0 : index
    %0 = vector.load %arg5[%c0, %c0_0] : memref<128x128xbf16, #tpu.memory_space<vmem>>, vector<128x128xbf16>
    %c0_1 = arith.constant 0 : index
    %c0_2 = arith.constant 0 : index
    %1 = vector.load %arg6[%c0_1, %c0_2] : memref<1x128xf32, #tpu.memory_space<vmem>>, vector<1x128xf32>
    %c0_i32 = arith.constant 0 : i32
    %c8_i32 = arith.constant 8 : i32
    %2 = arith.muli %c0_i32, %c8_i32 : i32
    %3 = tpu.assume_multiple %2, 8 : i32
    %c0_3 = arith.constant 0 : index
    %4 = arith.index_cast %3 : i32 to index
    %c0_4 = arith.constant 0 : index
    %5 = vector.load %arg3[%c0_3, %4, %c0_4] : memref<1x8x128xf32, #tpu.memory_space<vmem>>, vector<1x8x128xf32>
    %6 = vector.shape_cast %5 : vector<1x8x128xf32> to vector<8x128xf32>
    %7 = vector.shape_cast %6 : vector<8x128xf32> to vector<8x1x128xf32>
    %c0_5 = arith.constant 0 : index
    %c0_6 = arith.constant 0 : index
    %c0_7 = arith.constant 0 : index
    %8 = vector.load %arg4[%c0_5, %c0_6, %c0_7] : memref<1x16x128xf32, #tpu.memory_space<vmem>>, vector<1x16x128xf32>
    %9 = vector.shape_cast %8 : vector<1x16x128xf32> to vector<16x128xf32>
    %10 = vector.shape_cast %9 : vector<16x128xf32> to vector<1x16x128xf32>
    %11 = vector.broadcast %7 : vector<8x1x128xf32> to vector<8x16x128xf32>
    %12 = vector.broadcast %10 : vector<1x16x128xf32> to vector<8x16x128xf32>
    %13 = arith.addf %11, %12 : vector<8x16x128xf32>
    %14 = math.tanh %13 : vector<8x16x128xf32>
    %15 = arith.truncf %14 : vector<8x16x128xf32> to vector<8x16x128xbf16>
    %16 = vector.shape_cast %15 : vector<8x16x128xbf16> to vector<128x128xbf16>
    %cst = arith.constant dense<0.000000e+00> : vector<128x128xf32>
    %17 = tpu.matmul %16, %0, %cst {dimension_numbers = #tpu.dot_dimension_numbers<[1], [0], [0], [1], [0, 0, 1, 1], [], []>} : vector<128x128xbf16>, vector<128x128xbf16>, vector<128x128xf32> -> vector<128x128xf32>
    %18 = vector.broadcast %1 : vector<1x128xf32> to vector<128x128xf32>
    %19 = arith.addf %17, %18 : vector<128x128xf32>
    %20 = vector.shape_cast %19 : vector<128x128xf32> to vector<8x16x128xf32>
    %21 = vector.extract_strided_slice %20 {offsets = [0, 0, 0], sizes = [8, 8, 128], strides = [1, 1, 1]} : vector<8x16x128xf32> to vector<8x8x128xf32>
    %c0_8 = arith.constant 0 : index
    %22 = arith.index_cast %3 : i32 to index
    %c0_9 = arith.constant 0 : index
    %c0_10 = arith.constant 0 : index
    %23 = vector.load %arg7[%c0_8, %22, %c0_9, %c0_10] : memref<1x8x8x128xf32, #tpu.memory_space<vmem>>, vector<1x8x8x128xf32>
    %24 = vector.shape_cast %23 : vector<1x8x8x128xf32> to vector<8x8x128xf32>
    %25 = vector.shape_cast %21 : vector<8x8x128xf32> to vector<1x8x8x128xf32>
    tpu.vector_store %arg7[%c0_8, %22, %c0_9, %c0_10], %25 {strides = array<i32>} : memref<1x8x8x128xf32, #tpu.memory_space<vmem>>, vector<1x8x8x128xf32>,
    %c1_i32 = arith.constant 1 : i32
    return
  }
  func.func @transform_0(%arg0: i32, %arg1: i32, %arg2: i32) -> (i32, i32, i32) {
    %c0_i32 = arith.constant 0 : i32
    %c0_i32_0 = arith.constant 0 : i32
    return %arg0, %arg1, %c0_i32 : i32, i32, i32
  }
  func.func @transform_1(%arg0: i32, %arg1: i32, %arg2: i32) -> (i32, i32, i32) {
    %c0_i32 = arith.constant 0 : i32
    %c0_i32_0 = arith.constant 0 : i32
    %c0_i32_1 = arith.constant 0 : i32
    return %arg0, %c0_i32, %c0_i32_0 : i32, i32, i32
  }
  func.func @transform_2(%arg0: i32, %arg1: i32, %arg2: i32) -> (i32, i32) {
    %c0_i32 = arith.constant 0 : i32
    %c0_i32_0 = arith.constant 0 : i32
    return %c0_i32, %arg2 : i32, i32
  }
  func.func @transform_3(%arg0: i32, %arg1: i32, %arg2: i32) -> (i32, i32) {
    %c0_i32 = arith.constant 0 : i32
    %c0_i32_0 = arith.constant 0 : i32
    return %c0_i32, %arg2 : i32, i32
  }
  func.func @transform_4(%arg0: i32, %arg1: i32, %arg2: i32) -> (i32, i32, i32, i32) {
    %c0_i32 = arith.constant 0 : i32
    %c0_i32_0 = arith.constant 0 : i32
    return %arg0, %arg1, %c0_i32, %arg2 : i32, i32, i32, i32
  }
}

</mosaic_0001>

<llo_original>
// kernel: transducer_joint.3
$region0: #{transducer_joint.3}
  #allocation0 [shape = 'u32[]', space=smem, size = 0x4, offset = 0x4, fixed_abs, tag = 'smem constant byte address 0x4 - core index']
  #allocation1 [shape = 'u32[72,128]{1,0:T(1,128)}', space=vmem, size = 0x9000, scoped, tag = 'internal scratch']
  %s0 = inlined_call_operand.hbm [shape: f32[16,32], index: 0, kind: input, shape index: {}]
  %s1 = inlined_call_operand.vmem [shape: bf16[32,128], index: 1, kind: input, shape index: {}]
  %s2 = inlined_call_operand.hbm [shape: f32[1,128], index: 2, kind: input, shape index: {}]
  %s3 = inlined_call_operand.vmem [shape: f32[16,128], index: 3, kind: output, shape index: {}]
  %s4 = sld [smem:[#allocation0]]
  $region30: #{transducer_joint.3} parent=0
    _
  %s6 = ssub.s32 1, %s4
  %s7 = scalar_select 0, %s6, %s4
  $region1: #{transducer_joint.3} parent=0
    #allocation2 [shape = 'u8[8192]{0}', space=vmem, size = 0x2000, scoped, tag = 'input window, operand 0, single buffered']
    #allocation3 [shape = 's32[1]{0}', space=sflag, size = 0x4, scoped, tag = 'scoped memory for transducer_joint.3']
    #allocation4 [shape = 'u8[512]{0}', space=vmem, size = 0x400, scoped, tag = 'input window, operand 2, single buffered']
    #allocation5 [shape = 's32[1]{0}', space=sflag, size = 0x4, scoped, tag = 'scoped memory for transducer_joint.3']
    %8 = vsyncpa [#allocation3], 0
    %9 = vsyncpa [#allocation5], 0
    // Predicated region
    $region2: #{transducer_joint.3} parent=1 // pred_check
      _
    $region3: #{transducer_joint.3} parent=1 // pred_check_branch
      %11 = sbr.rel (0) target = $region5
    $region4: #{transducer_joint.3} parent=1 // pred_region
      %13 = vsyncadd [#allocation3], 0
      %s14 = sshll.u32 %s0, 4
      %s15 = int_to_ptr.hbm [resolvable:$true] %s14
      %s16 = sshll.u32 [#allocation2], 4
      %s17 = int_to_ptr.vmem [resolvable:$true] %s16
      %22 = dma.hbm_to_vmem [thread:$0]  %s15, 256, %s17, [#allocation3], 128, 128, 8
    $region5: #{transducer_joint.3} parent=1 // pred_fallthru
      _
    // Predicated region
    $region6: #{transducer_joint.3} parent=1 // pred_check
      _
    $region7: #{transducer_joint.3} parent=1 // pred_check_branch
      %24 = sbr.rel (0) target = $region9
    $region8: #{transducer_joint.3} parent=1 // pred_region
      _
    $region9: #{transducer_joint.3} parent=1 // pred_fallthru
      _
    // Predicated region
    $region10: #{transducer_joint.3} parent=1 // pred_check
      _
    $region11: #{transducer_joint.3} parent=1 // pred_check_branch
      %26 = sbr.rel (0) target = $region13
    $region12: #{transducer_joint.3} parent=1 // pred_region
      %28 = vsyncadd [#allocation5], 0
      %s30 = sshll.u32 %s2, 4
      %s31 = int_to_ptr.hbm [resolvable:$true] %s30
      %s32 = sshll.u32 [#allocation4], 4
      %s33 = int_to_ptr.vmem [resolvable:$true] %s32
      %35 = dma.hbm_to_vmem [thread:$0]  %s31, 16, %s33, [#allocation5]
    $region13: #{transducer_joint.3} parent=1 // pred_fallthru
      _
    // Predicated region
    $region14: #{transducer_joint.3} parent=1 // pred_check
      _
    $region15: #{transducer_joint.3} parent=1 // pred_check_branch
      %37 = sbr.rel (0) target = $region17
    $region16: #{transducer_joint.3} parent=1 // pred_region
      %39 = dma.done [#allocation3], 256
    $region17: #{transducer_joint.3} parent=1 // pred_fallthru
      _
    // Predicated region
    $region18: #{transducer_joint.3} parent=1 // pred_check
      _
    $region19: #{transducer_joint.3} parent=1 // pred_check_branch
      %41 = sbr.rel (0) target = $region21
    $region20: #{transducer_joint.3} parent=1 // pred_region
      %43 = dma.done [#allocation5], 16
    $region21: #{transducer_joint.3} parent=1 // pred_fallthru
      _
    %v45 = vld [vmem:[#allocation2] sm:$0xff]
    %v46 = vld [vmem:[#allocation2 + $0x8] sm:$0xff]
    %v47 = vpack.c.bf16 %v46, %v45
    %v48 = vld [vmem:[%s1] sm:$0xf]
    %v49 = vld [vmem:[%s1 + $0x4] sm:$0xf]
    %v50 = vld [vmem:[%s1 + $0x8] sm:$0xf]
    %v51 = vld [vmem:[%s1 + $0xc] sm:$0xf]
    %v52 = vld [vmem:[#allocation4] sm:$0x1]
    %v54 = vperm.slane %v52, 0
    %v60 = vunpack.c.l.b16 %v48
    %v61 = vunpack.c.l.b16 %v49
    %v62 = vunpack.c.l.b16 %v50
    %v63 = vunpack.c.l.b16 %v51
    %v64 = vpack.c.b16 %v61, %v60
    %v65 = vpack.c.b16 %v63, %v62
    %vm68 = vcmask 261120
    %v70 = vsel %vm68, %v47, 0
    %72 = vmatpush.bf16.msra.mxu0 0
    %73 = vmatpush.bf16.msra.mxu0 0
    %74 = vmatpush.bf16.msra.mxu0 0
    %75 = vmatpush.bf16.msra.mxu0 0
    %76 = vmatpush.bf16.msra.mxu0 0
    %77 = vmatpush.bf16.msra.mxu0 0
    %78 = vmatpush.bf16.msra.mxu0 %v65
    %79 = vmatpush.bf16.msra.mxu0 %v64
    %80 = vmatmul.bf16.gmra.mxu0 %v70
    %v81 = vpop.f32.mrf.mxu0
    %v82 = vadd.f32 %v54, %v81
    %v83 = vpop.f32.mrf.mxu0
    %v84 = vadd.f32 %v54, %v83
    %85 = vdwg.mxu0
    %86 = vst [vmem:[%s3] sm:$0xff] %v82
    %87 = vst [vmem:[%s3 + $0x8] sm:$0xff] %v84
    // Predicated region
    $region22: #{transducer_joint.3} parent=1 // pred_check
      _
    $region23: #{transducer_joint.3} parent=1 // pred_check_branch
      %89 = sbr.rel (0) target = $region25
    $region24: #{transducer_joint.3} parent=1 // pred_region
      _
    $region25: #{transducer_joint.3} parent=1 // pred_fallthru
      _
    // Predicated region
    $region26: #{transducer_joint.3} parent=1 // pred_check
      _
    $region27: #{transducer_joint.3} parent=1 // pred_check_branch
      %91 = sbr.rel (0) target = $region29
    $region28: #{transducer_joint.3} parent=1 // pred_region
      _
    $region29: #{transducer_joint.3} parent=1 // pred_fallthru
      _
    %92 = vsyncpa [#allocation3], 1
    %93 = vsyncpa [#allocation5], 1

// kernel: transducer_joint.4
$region0: #{transducer_joint.4}
  #allocation0 [shape = 'u32[]', space=smem, size = 0x4, offset = 0x4, fixed_abs, tag = 'smem constant byte address 0x4 - core index']
  #allocation1 [shape = 'u32[72,128]{1,0:T(1,128)}', space=vmem, size = 0x9000, scoped, tag = 'internal scratch']
  %s0 = inlined_call_operand.hbm [shape: f32[16,48], index: 0, kind: input, shape index: {}]
  %s1 = inlined_call_operand.vmem [shape: bf16[48,128], index: 1, kind: input, shape index: {}]
  %s2 = inlined_call_operand.hbm [shape: f32[1,128], index: 2, kind: input, shape index: {}]
  %s3 = inlined_call_operand.vmem [shape: f32[16,128], index: 3, kind: output, shape index: {}]
  %s4 = sld [smem:[#allocation0]]
  $region30: #{transducer_joint.4} parent=0
    _
  %s6 = ssub.s32 1, %s4
  %s7 = scalar_select 0, %s6, %s4
  $region1: #{transducer_joint.4} parent=0
    #allocation2 [shape = 'u8[8192]{0}', space=vmem, size = 0x2000, scoped, tag = 'input window, operand 0, single buffered']
    #allocation3 [shape = 's32[1]{0}', space=sflag, size = 0x4, scoped, tag = 'scoped memory for transducer_joint.4']
    #allocation4 [shape = 'u8[512]{0}', space=vmem, size = 0x400, scoped, tag = 'input window, operand 2, single buffered']
    #allocation5 [shape = 's32[1]{0}', space=sflag, size = 0x4, scoped, tag = 'scoped memory for transducer_joint.4']
    %8 = vsyncpa [#allocation3], 0
    %9 = vsyncpa [#allocation5], 0
    // Predicated region
    $region2: #{transducer_joint.4} parent=1 // pred_check
      _
    $region3: #{transducer_joint.4} parent=1 // pred_check_branch
      %11 = sbr.rel (0) target = $region5
    $region4: #{transducer_joint.4} parent=1 // pred_region
      %13 = vsyncadd [#allocation3], 0
      %s14 = sshll.u32 %s0, 4
      %s15 = int_to_ptr.hbm [resolvable:$true] %s14
      %s16 = sshll.u32 [#allocation2], 4
      %s17 = int_to_ptr.vmem [resolvable:$true] %s16
      %22 = dma.hbm_to_vmem [thread:$0]  %s15, 256, %s17, [#allocation3], 128, 128, 8
    $region5: #{transducer_joint.4} parent=1 // pred_fallthru
      _
    // Predicated region
    $region6: #{transducer_joint.4} parent=1 // pred_check
      _
    $region7: #{transducer_joint.4} parent=1 // pred_check_branch
      %24 = sbr.rel (0) target = $region9
    $region8: #{transducer_joint.4} parent=1 // pred_region
      _
    $region9: #{transducer_joint.4} parent=1 // pred_fallthru
      _
    // Predicated region
    $region10: #{transducer_joint.4} parent=1 // pred_check
      _
    $region11: #{transducer_joint.4} parent=1 // pred_check_branch
      %26 = sbr.rel (0) target = $region13
    $region12: #{transducer_joint.4} parent=1 // pred_region
      %28 = vsyncadd [#allocation5], 0
      %s30 = sshll.u32 %s2, 4
      %s31 = int_to_ptr.hbm [resolvable:$true] %s30
      %s32 = sshll.u32 [#allocation4], 4
      %s33 = int_to_ptr.vmem [resolvable:$true] %s32
      %35 = dma.hbm_to_vmem [thread:$0]  %s31, 16, %s33, [#allocation5]
    $region13: #{transducer_joint.4} parent=1 // pred_fallthru
      _
    // Predicated region
    $region14: #{transducer_joint.4} parent=1 // pred_check
      _
    $region15: #{transducer_joint.4} parent=1 // pred_check_branch
      %37 = sbr.rel (0) target = $region17
    $region16: #{transducer_joint.4} parent=1 // pred_region
      %39 = dma.done [#allocation3], 256
    $region17: #{transducer_joint.4} parent=1 // pred_fallthru
      _
    // Predicated region
    $region18: #{transducer_joint.4} parent=1 // pred_check
      _
    $region19: #{transducer_joint.4} parent=1 // pred_check_branch
      %41 = sbr.rel (0) target = $region21
    $region20: #{transducer_joint.4} parent=1 // pred_region
      %43 = dma.done [#allocation5], 16
    $region21: #{transducer_joint.4} parent=1 // pred_fallthru
      _
    %v45 = vld [vmem:[#allocation2] sm:$0xff]
    %v46 = vld [vmem:[#allocation2 + $0x8] sm:$0xff]
    %v47 = vpack.c.bf16 %v46, %v45
    %v48 = vld [vmem:[%s1] sm:$0xf]
    %v49 = vld [vmem:[%s1 + $0x4] sm:$0xf]
    %v50 = vld [vmem:[%s1 + $0x8] sm:$0xf]
    %v51 = vld [vmem:[%s1 + $0xc] sm:$0xf]
    %v52 = vld [vmem:[%s1 + $0x10] sm:$0xf]
    %v53 = vld [vmem:[%s1 + $0x14] sm:$0xf]
    %v54 = vld [vmem:[#allocation4] sm:$0x1]
    %v56 = vperm.slane %v54, 0
    %v64 = vunpack.c.l.b16 %v48
    %v65 = vunpack.c.l.b16 %v49
    %v66 = vunpack.c.l.b16 %v50
    %v67 = vunpack.c.l.b16 %v51
    %v68 = vunpack.c.l.b16 %v52
    %v69 = vunpack.c.l.b16 %v53
    %v70 = vpack.c.b16 %v65, %v64
    %v71 = vpack.c.b16 %v67, %v66
    %v72 = vpack.c.b16 %v69, %v68
    %vm76 = vcmask 392192
    %v78 = vsel %vm76, %v47, 0
    %80 = vmatpush.bf16.msra.mxu0 0
    %81 = vmatpush.bf16.msra.mxu0 0
    %82 = vmatpush.bf16.msra.mxu0 0
    %83 = vmatpush.bf16.msra.mxu0 0
    %84 = vmatpush.bf16.msra.mxu0 0
    %85 = vmatpush.bf16.msra.mxu0 %v72
    %86 = vmatpush.bf16.msra.mxu0 %v71
    %87 = vmatpush.bf16.msra.mxu0 %v70
    %88 = vmatmul.bf16.gmra.mxu0 %v78
    %v89 = vpop.f32.mrf.mxu0
    %v90 = vadd.f32 %v56, %v89
    %v91 = vpop.f32.mrf.mxu0
    %v92 = vadd.f32 %v56, %v91
    %93 = vdwg.mxu0
    %94 = vst [vmem:[%s3] sm:$0xff] %v90
    %95 = vst [vmem:[%s3 + $0x8] sm:$0xff] %v92
    // Predicated region
    $region22: #{transducer_joint.4} parent=1 // pred_check
      _
    $region23: #{transducer_joint.4} parent=1 // pred_check_branch
      %97 = sbr.rel (0) target = $region25
    $region24: #{transducer_joint.4} parent=1 // pred_region
      _
    $region25: #{transducer_joint.4} parent=1 // pred_fallthru
      _
    // Predicated region
    $region26: #{transducer_joint.4} parent=1 // pred_check
      _
    $region27: #{transducer_joint.4} parent=1 // pred_check_branch
      %99 = sbr.rel (0) target = $region29
    $region28: #{transducer_joint.4} parent=1 // pred_region
      _
    $region29: #{transducer_joint.4} parent=1 // pred_fallthru
      _
    %100 = vsyncpa [#allocation3], 1
    %101 = vsyncpa [#allocation5], 1

// kernel: transducer_joint.5
$region0: #{transducer_joint.5}
  #allocation0 [shape = 'u32[]', space=smem, size = 0x4, offset = 0x4, fixed_abs, tag = 'smem constant byte address 0x4 - core index']
  #allocation1 [shape = 'u32[72,128]{1,0:T(1,128)}', space=vmem, size = 0x9000, scoped, tag = 'internal scratch']
  %s0 = inlined_call_operand.vmem [shape: f32[2,8,128], index: 0, kind: input, shape index: {}]
  %s1 = inlined_call_operand.vmem [shape: f32[2,16,128], index: 1, kind: input, shape index: {}]
  %s2 = inlined_call_operand.vmem [shape: bf16[128,128], index: 2, kind: input, shape index: {}]
  %s3 = inlined_call_operand.vmem [shape: f32[1,128], index: 3, kind: input, shape index: {}]
  %s4 = inlined_call_operand.hbm [shape: f32[2,8,8,128], index: 4, kind: output, shape index: {}]
  %s5 = sld [smem:[#allocation0]]
  $region49: #{transducer_joint.5} parent=0
    _
  %s7 = ssub.s32 1, %s5
  %s8 = scalar_select 0, %s7, %s5
  $region1: #{transducer_joint.5} parent=0
    #allocation2 [shape = 'u8[65536]{0}', space=vmem, size = 0x10000, scoped, tag = 'output window, operand 0']
    #allocation3 [shape = 's32[2]{0}', space=sflag, size = 0x8, scoped, tag = 'scoped memory for transducer_joint.5']
    %9 = vsyncpa [#allocation3], 0
    %s10 = scalar_lea.sflag [#allocation3], 1
    %11 = vsyncpa %s10, 0
    loop: start=0, step=1, limit=4
    $region2: #{transducer_joint.5} parent=1 // loop_pre_header
      _
    $region3: #{transducer_joint.5} parent=1 // loop_header
      %s13 = sphi 0, %s17
      %p14 = scmp.ge.s32.totalorder %s13, 4
      %s20 = sphi 0, %s39
      %s21 = sphi 0, %s35
      %s22 = sphi 0, %s31
      %s23 = sphi 0, %s20
      %s24 = sphi 0, %s21
      %s25 = sphi 0, %s22
      %s26 = sphi 0, %s23
      %s27 = sphi 0, %s24
      %s28 = sphi 0, %s25
      %s44 = sphi 0, %s46
      %s47 = sphi 0, %s44
      %s48 = sphi 0, %s47
      %s64 = sphi 0, %s48
      %s70 = sphi 0, %s72
      %s73 = sphi 0, %s70
      %s74 = sphi 0, %s73
      %s90 = sphi 0, %s74
      %s96 = sphi 0, %s98
      %s99 = sphi 0, %s96
      %s100 = sphi 0, %s99
      %s116 = sphi 0, %s100
      %s122 = sphi 0, %s124
      %s125 = sphi 0, %s122
      %s126 = sphi 0, %s125
      %s142 = sphi 0, %s126
      %s152 = sphi 0, %s154
      %s155 = sphi 0, %s152
      %s156 = sphi 0, %s155
      %s172 = sphi 0, %s156
    $region4: #{transducer_joint.5} parent=1 // loop_header_branch
      %16 = sbr.rel (%p14) target = $region8
    $region5: #{transducer_joint.5} parent=1 // loop_body
      %s18 = ssub.s32 %s13, 1
      %s19 = ssub.s32 %s13, 2
      %s29 = sadd.s32 1, %s22
      %p30 = scmp.ge.s32.totalorder %s29, 1
      %s31 = scalar_select %p30, 0, %s29
      %s32 = sadd.s32 1, %s21
      %s33 = scalar_select %p30, %s32, %s21
      %p34 = scmp.ge.s32.totalorder %s33, 1
      %s35 = scalar_select %p34, 0, %s33
      %s36 = sadd.s32 1, %s20
      %s37 = scalar_select %p34, %s36, %s20
      %p38 = scmp.ge.s32.totalorder %s37, 2
      %s39 = scalar_select %p38, 0, %s37
      %s40 = ssub.s32 %s20, %s39
      %s41 = ssub.s32 %s21, %s35
      %s42 = sor.u32 %s40, %s41
      %p43 = scmp.eq.s32.totalorder %s42, 0
      %s45 = sadd.s32 %s44, 1
      %s46 = scalar_select %p43, %s44, %s45
      %p49 = pneg %p43
      %p50 = scmp.eq.s32.totalorder %s13, 1
      %p51 = por %p49, %p50
      %p52 = scmp.ne.s32.totalorder %s44, %s47
      %p53 = scmp.eq.s32.totalorder %s13, 0
      %p54 = por %p52, %p53
      %p55 = scmp.ne.s32.totalorder %s44, %s47
      %p56 = scmp.eq.s32.totalorder %s18, 1
      %p57 = por %p55, %p56
      %p58 = scmp.ne.s32.totalorder %s47, %s48
      %p59 = scmp.eq.s32.totalorder %s18, 0
      %p60 = por %p58, %p59
      %p61 = scmp.ne.s32.totalorder %s47, %s48
      %p62 = scmp.eq.s32.totalorder %s19, 1
      %p63 = por %p61, %p62
      %p65 = scmp.ne.s32.totalorder %s48, %s64
      %p66 = scmp.eq.s32.totalorder %s19, 0
      %p67 = por %p65, %p66
      %s68 = ssub.s32 %s20, %s39
      %p69 = scmp.eq.s32.totalorder %s68, 0
      %s71 = sadd.s32 %s70, 1
      %s72 = scalar_select %p69, %s70, %s71
      %p75 = pneg %p69
      %p76 = scmp.eq.s32.totalorder %s13, 1
      %p77 = por %p75, %p76
      %p78 = scmp.ne.s32.totalorder %s70, %s73
      %p79 = scmp.eq.s32.totalorder %s13, 0
      %p80 = por %p78, %p79
      %p81 = scmp.ne.s32.totalorder %s70, %s73
      %p82 = scmp.eq.s32.totalorder %s18, 1
      %p83 = por %p81, %p82
      %p84 = scmp.ne.s32.totalorder %s73, %s74
      %p85 = scmp.eq.s32.totalorder %s18, 0
      %p86 = por %p84, %p85
      %p87 = scmp.ne.s32.totalorder %s73, %s74
      %p88 = scmp.eq.s32.totalorder %s19, 1
      %p89 = por %p87, %p88
      %p91 = scmp.ne.s32.totalorder %s74, %s90
      %p92 = scmp.eq.s32.totalorder %s19, 0
      %p93 = por %p91, %p92
      %s94 = ssub.s32 %s22, %s31
      %p95 = scmp.eq.s32.totalorder %s94, 0
      %s97 = sadd.s32 %s96, 1
      %s98 = scalar_select %p95, %s96, %s97
      %p101 = pneg %p95
      %p102 = scmp.eq.s32.totalorder %s13, 1
      %p103 = por %p101, %p102
      %p104 = scmp.ne.s32.totalorder %s96, %s99
      %p105 = scmp.eq.s32.totalorder %s13, 0
      %p106 = por %p104, %p105
      %p107 = scmp.ne.s32.totalorder %s96, %s99
      %p108 = scmp.eq.s32.totalorder %s18, 1
      %p109 = por %p107, %p108
      %p110 = scmp.ne.s32.totalorder %s99, %s100
      %p111 = scmp.eq.s32.totalorder %s18, 0
      %p112 = por %p110, %p111
      %p113 = scmp.ne.s32.totalorder %s99, %s100
      %p114 = scmp.eq.s32.totalorder %s19, 1
      %p115 = por %p113, %p114
      %p117 = scmp.ne.s32.totalorder %s100, %s116
      %p118 = scmp.eq.s32.totalorder %s19, 0
      %p119 = por %p117, %p118
      %s120 = ssub.s32 %s22, %s31
      %p121 = scmp.eq.s32.totalorder %s120, 0
      %s123 = sadd.s32 %s122, 1
      %s124 = scalar_select %p121, %s122, %s123
      %p127 = pneg %p121
      %p128 = scmp.eq.s32.totalorder %s13, 1
      %p129 = por %p127, %p128
      %p130 = scmp.ne.s32.totalorder %s122, %s125
      %p131 = scmp.eq.s32.totalorder %s13, 0
      %p132 = por %p130, %p131
      %p133 = scmp.ne.s32.totalorder %s122, %s125
      %p134 = scmp.eq.s32.totalorder %s18, 1
      %p135 = por %p133, %p134
      %p136 = scmp.ne.s32.totalorder %s125, %s126
      %p137 = scmp.eq.s32.totalorder %s18, 0
      %p138 = por %p136, %p137
      %p139 = scmp.ne.s32.totalorder %s125, %s126
      %p140 = scmp.eq.s32.totalorder %s19, 1
      %p141 = por %p139, %p140
      %p143 = scmp.ne.s32.totalorder %s126, %s142
      %p144 = scmp.eq.s32.totalorder %s19, 0
      %p145 = por %p143, %p144
      %s146 = ssub.s32 %s20, %s39
      %s147 = ssub.s32 %s21, %s35
      %s148 = sor.u32 %s146, %s147
      %s149 = ssub.s32 %s22, %s31
      %s150 = sor.u32 %s148, %s149
      %p151 = scmp.eq.s32.totalorder %s150, 0
      %s153 = sadd.s32 %s152, 1
      %s154 = scalar_select %p151, %s152, %s153
      %p157 = pneg %p151
      %p158 = scmp.eq.s32.totalorder %s13, 1
      %p159 = por %p157, %p158
      %p160 = scmp.ne.s32.totalorder %s152, %s155
      %p161 = scmp.eq.s32.totalorder %s13, 0
      %p162 = por %p160, %p161
      %p163 = scmp.ne.s32.totalorder %s152, %s155
      %p164 = scmp.eq.s32.totalorder %s18, 1
      %p165 = por %p163, %p164
      %p166 = scmp.ne.s32.totalorder %s155, %s156
      %p167 = scmp.eq.s32.totalorder %s18, 0
      %p168 = por %p166, %p167
      %p169 = scmp.ne.s32.totalorder %s155, %s156
      %p170 = scmp.eq.s32.totalorder %s19, 1
      %p171 = por %p169, %p170
      %p173 = scmp.ne.s32.totalorder %s156, %s172
      %p174 = scmp.eq.s32.totalorder %s19, 0
      %p175 = por %p173, %p174
      %p176 = scmp.le.s32.totalorder 1, %s13
      %p177 = scmp.lt.s32.totalorder %s13, 3
      %p178 = pnand %p176, %p177
      %p179 = pneg %p178
      // Predicated region
      $region9: #{transducer_joint.5} parent=5 // pred_check
        _
      $region10: #{transducer_joint.5} parent=5 // pred_check_branch
        %181 = sbr.rel (%p178) target = $region12
      $region11: #{transducer_joint.5} parent=5 // pred_region
        %s182 = ssub.s32 %s13, 1
        // Predicated region
        $region13: #{transducer_joint.5} parent=11 // pred_check
          %p183 = pneg %p112
        $region14: #{transducer_joint.5} parent=11 // pred_check_branch
          %185 = sbr.rel (%p183) target = $region16
        $region15: #{transducer_joint.5} parent=11 // pred_region
          %p186 = scmp.lt.s32.totalorder %s25, 0
          %s187 = scalar_select %p186, %s25, 0
          %s188 = smul.addr %s187, 4
          %s189 = scalar_lea.vmem %s2, %s188
        $region16: #{transducer_joint.5} parent=11 // pred_fallthru
          _
        // Predicated region
        $region17: #{transducer_joint.5} parent=11 // pred_check
          %p190 = pneg %p138
        $region18: #{transducer_joint.5} parent=11 // pred_check_branch
          %192 = sbr.rel (%p190) target = $region20
        $region19: #{transducer_joint.5} parent=11 // pred_region
          %p193 = scmp.lt.s32.totalorder %s25, 0
          %s194 = scalar_select %p193, %s25, 0
          %s195 = scalar_lea.vmem %s3, %s194
        $region20: #{transducer_joint.5} parent=11 // pred_fallthru
          _
      $region12: #{transducer_joint.5} parent=5 // pred_fallthru
        _
      %p196 = scmp.lt.s32.totalorder %s13, 2
      // Predicated region
      $region21: #{transducer_joint.5} parent=5 // pred_check
        %p197 = pneg %p196
      $region22: #{transducer_joint.5} parent=5 // pred_check_branch
        %199 = sbr.rel (%p197) target = $region24
      $region23: #{transducer_joint.5} parent=5 // pred_region
        // Predicated region
        $region25: #{transducer_joint.5} parent=23 // pred_check
          %p200 = pneg %p54
        $region26: #{transducer_joint.5} parent=23 // pred_check_branch
          %202 = sbr.rel (%p200) target = $region28
        $region27: #{transducer_joint.5} parent=23 // pred_region
          %p203 = scmp.lt.s32.totalorder %s20, 1
          %s204 = scalar_select %p203, %s20, 1
          %p205 = scmp.lt.s32.totalorder %s21, 0
          %s206 = scalar_select %p205, %s21, 0
          %s207 = sadd.s32 %s206, %s204
          %s208 = smul.addr %s207, 8
          %s209 = scalar_lea.vmem %s0, %s208
        $region28: #{transducer_joint.5} parent=23 // pred_fallthru
          _
        // Predicated region
        $region29: #{transducer_joint.5} parent=23 // pred_check
          %p210 = pneg %p80
        $region30: #{transducer_joint.5} parent=23 // pred_check_branch
          %212 = sbr.rel (%p210) target = $region32
        $region31: #{transducer_joint.5} parent=23 // pred_region
          %p213 = scmp.lt.s32.totalorder %s20, 1
          %s214 = scalar_select %p213, %s20, 1
          %s215 = smul.addr %s214, 2
          %s216 = smul.addr %s215, 8
          %s217 = scalar_lea.vmem %s1, %s216
        $region32: #{transducer_joint.5} parent=23 // pred_fallthru
          _
      $region24: #{transducer_joint.5} parent=5 // pred_fallthru
        _
      %p218 = scmp.le.s32.totalorder 1, %s13
      %p219 = scmp.lt.s32.totalorder %s13, 3
      %p220 = pnand %p218, %p219
      %p221 = pneg %p220
      // Predicated region
      $region33: #{transducer_joint.5} parent=5 // pred_check
        _
      $region34: #{transducer_joint.5} parent=5 // pred_check_branch
        %223 = sbr.rel (%p220) target = $region36
      $region35: #{transducer_joint.5} parent=5 // pred_region
        %s224 = ssub.s32 %s13, 1
        %p225 = scmp.lt.s32.totalorder %s23, 1
        %s226 = scalar_select %p225, %s23, 1
        %p227 = scmp.lt.s32.totalorder %s24, 0
        %s228 = scalar_select %p227, %s24, 0
        %s229 = sadd.s32 %s228, %s226
        %s230 = smul.addr %s229, 8
        %s231 = scalar_lea.vmem %s0, %s230
        %p232 = pneg %p60
        %p233 = pneg %p57
        %p234 = scmp.lt.s32.totalorder %s23, 1
        %s235 = scalar_select %p234, %s23, 1
        %s236 = smul.addr %s235, 2
        %s237 = smul.addr %s236, 8
        %s238 = scalar_lea.vmem %s1, %s237
        %p239 = pneg %p86
        %p240 = pneg %p83
        %p241 = scmp.lt.s32.totalorder %s25, 0
        %s242 = scalar_select %p241, %s25, 0
        %s243 = smul.addr %s242, 4
        %s244 = scalar_lea.vmem %s2, %s243
        %p245 = pneg %p112
        %p246 = pneg %p109
        %p247 = scmp.lt.s32.totalorder %s25, 0
        %s248 = scalar_select %p247, %s25, 0
        %s249 = scalar_lea.vmem %s3, %s248
        %p250 = pneg %p138
        %p251 = pneg %p135
        %p252 = pneg %p168
        %p253 = pneg %p165
        %s254 = sand.u32 %s155, 1
        %s255 = scalar_lea.sflag [#allocation3], %s254
        %s256 = sand.u32 %s155, 1
        %s257 = smul.addr %s256, 64
        %s258 = scalar_lea.vmem [#allocation2], %s257
        %p259 = scmp.lt.s32.totalorder %s23, 1
        %s260 = scalar_select %p259, %s23, 1
        %p261 = scmp.lt.s32.totalorder %s24, 0
        %s262 = scalar_select %p261, %s24, 0
        %s263 = sadd.s32 %s262, %s260
        %s264 = smul.addr %s263, 8
        %s265 = scalar_lea.vmem %s0, %s264
        %p266 = scmp.lt.s32.totalorder %s23, 1
        %s267 = scalar_select %p266, %s23, 1
        %s268 = smul.addr %s267, 2
        %s269 = smul.addr %s268, 8
        %s270 = scalar_lea.vmem %s1, %s269
        %p271 = scmp.lt.s32.totalorder %s25, 0
        %s272 = scalar_select %p271, %s25, 0
        %s273 = smul.addr %s272, 4
        %s274 = scalar_lea.vmem %s2, %s273
        %p275 = scmp.lt.s32.totalorder %s25, 0
        %s276 = scalar_select %p275, %s25, 0
        %s277 = scalar_lea.vmem %s3, %s276
        %s278 = smul.u32 8, %s24
        %v279 = vld [vmem:[%s274] sm:$0xf]
        %v280 = vld [vmem:[%s274 + $0x4] sm:$0xf]
        %v281 = vld [vmem:[%s274 + $0x8] sm:$0xf]
        %v282 = vld [vmem:[%s274 + $0xc] sm:$0xf]
        %v283 = vld [vmem:[%s274 + $0x10] sm:$0xf]
        %v284 = vld [vmem:[%s274 + $0x14] sm:$0xf]
        %v285 = vld [vmem:[%s274 + $0x18] sm:$0xf]
        %v286 = vld [vmem:[%s274 + $0x1c] sm:$0xf]
        %v287 = vld [vmem:[%s274 + $0x20] sm:$0xf]
        %v288 = vld [vmem:[%s274 + $0x24] sm:$0xf]
        %v289 = vld [vmem:[%s274 + $0x28] sm:$0xf]
        %v290 = vld [vmem:[%s274 + $0x2c] sm:$0xf]
        %v291 = vld [vmem:[%s274 + $0x30] sm:$0xf]
        %v292 = vld [vmem:[%s274 + $0x34] sm:$0xf]
        %v293 = vld [vmem:[%s274 + $0x38] sm:$0xf]
        %v294 = vld [vmem:[%s274 + $0x3c] sm:$0xf]
        %v295 = vld [vmem:[%s277] sm:$0x1]
        %v296 = vld [vmem:[%s265] sm:$0xff]
        %v298 = vrot.slane %v296, 1
        %v299 = vrot.slane %v296, 2
        %v300 = vrot.slane %v296, 3
        %v301 = vrot.slane %v296, 4
        %v302 = vrot.slane %v296, 5
        %v303 = vrot.slane %v296, 6
        %v304 = vrot.slane %v296, 7
        %v305 = vld [vmem:[%s270] sm:$0xff]
        %v306 = vld [vmem:[%s270 + $0x8] sm:$0xff]
        %v307 = vperm.slane %v296, 0
        %v308 = vperm.slane %v298, 0
        %v309 = vperm.slane %v299, 0
        %v310 = vperm.slane %v300, 0
        %v311 = vperm.slane %v301, 0
        %v312 = vperm.slane %v302, 0
        %v313 = vperm.slane %v303, 0
        %v314 = vperm.slane %v304, 0
        %v323 = vadd.f32 %v307, %v305
        %v324 = vadd.f32 %v307, %v306
        %v325 = vadd.f32 %v308, %v305
        %v326 = vadd.f32 %v308, %v306
        %v327 = vadd.f32 %v309, %v305
        %v328 = vadd.f32 %v309, %v306
        %v329 = vadd.f32 %v310, %v305
        %v330 = vadd.f32 %v310, %v306
        %v331 = vadd.f32 %v311, %v305
        %v332 = vadd.f32 %v311, %v306
        %v333 = vadd.f32 %v312, %v305
        %v334 = vadd.f32 %v312, %v306
        %v335 = vadd.f32 %v313, %v305
        %v336 = vadd.f32 %v313, %v306
        %v337 = vadd.f32 %v314, %v305
        %v338 = vadd.f32 %v314, %v306
        %v339 = vtanh.pop %v323
        %v340 = vtanh.pop %v324
        %v341 = vtanh.pop %v325
        %v342 = vtanh.pop %v326
        %v343 = vtanh.pop %v327
        %v344 = vtanh.pop %v328
        %v345 = vtanh.pop %v329
        %v346 = vtanh.pop %v330
        %v347 = vtanh.pop %v331
        %v348 = vtanh.pop %v332
        %v349 = vtanh.pop %v333
        %v350 = vtanh.pop %v334
        %v351 = vtanh.pop %v335
        %v352 = vtanh.pop %v336
        %v353 = vtanh.pop %v337
        %v354 = vtanh.pop %v338
        %v355 = vpack.c.bf16 %v339, %v339
        %v356 = vpack.c.bf16 %v340, %v340
        %v357 = vpack.c.bf16 %v341, %v341
        %v358 = vpack.c.bf16 %v342, %v342
        %v359 = vpack.c.bf16 %v343, %v343
        %v360 = vpack.c.bf16 %v344, %v344
        %v361 = vpack.c.bf16 %v345, %v345
        %v362 = vpack.c.bf16 %v346, %v346
        %v363 = vpack.c.bf16 %v347, %v347
        %v364 = vpack.c.bf16 %v348, %v348
        %v365 = vpack.c.bf16 %v349, %v349
        %v366 = vpack.c.bf16 %v350, %v350
        %v367 = vpack.c.bf16 %v351, %v351
        %v368 = vpack.c.bf16 %v352, %v352
        %v369 = vpack.c.bf16 %v353, %v353
        %v370 = vpack.c.bf16 %v354, %v354
        %v372 = vperm.slane %v295, 0
        %v390 = vunpack.c.l.b16 %v355
        %v391 = vunpack.c.l.b16 %v356
        %v392 = vunpack.c.l.b16 %v357
        %v393 = vunpack.c.l.b16 %v358
        %v394 = vunpack.c.l.b16 %v359
        %v395 = vunpack.c.l.b16 %v360
        %v396 = vunpack.c.l.b16 %v361
        %v397 = vunpack.c.l.b16 %v362
        %v398 = vunpack.c.l.b16 %v363
        %v399 = vunpack.c.l.b16 %v364
        %v400 = vunpack.c.l.b16 %v365
        %v401 = vunpack.c.l.b16 %v366
        %v402 = vunpack.c.l.b16 %v367
        %v403 = vunpack.c.l.b16 %v368
        %v404 = vunpack.c.l.b16 %v369
        %v405 = vunpack.c.l.b16 %v370
        %v406 = vpack.c.b16 %v391, %v390
        %v407 = vpack.c.b16 %v393, %v392
        %v408 = vpack.c.b16 %v395, %v394
        %v409 = vpack.c.b16 %v397, %v396
        %v410 = vpack.c.b16 %v399, %v398
        %v411 = vpack.c.b16 %v401, %v400
        %v412 = vpack.c.b16 %v403, %v402
        %v413 = vpack.c.b16 %v405, %v404
        %v438 = vunpack.c.l.b16 %v279
        %v439 = vunpack.c.l.b16 %v280
        %v440 = vunpack.c.l.b16 %v281
        %v441 = vunpack.c.l.b16 %v282
        %v442 = vunpack.c.l.b16 %v283
        %v443 = vunpack.c.l.b16 %v284
        %v444 = vunpack.c.l.b16 %v285
        %v445 = vunpack.c.l.b16 %v286
        %v446 = vunpack.c.l.b16 %v287
        %v447 = vunpack.c.l.b16 %v288
        %v448 = vunpack.c.l.b16 %v289
        %v449 = vunpack.c.l.b16 %v290
        %v450 = vunpack.c.l.b16 %v291
        %v451 = vunpack.c.l.b16 %v292
        %v452 = vunpack.c.l.b16 %v293
        %v453 = vunpack.c.l.b16 %v294
        %v454 = vpack.c.b16 %v439, %v438
        %v455 = vpack.c.b16 %v441, %v440
        %v456 = vpack.c.b16 %v443, %v442
        %v457 = vpack.c.b16 %v445, %v444
        %v458 = vpack.c.b16 %v447, %v446
        %v459 = vpack.c.b16 %v449, %v448
        %v460 = vpack.c.b16 %v451, %v450
        %v461 = vpack.c.b16 %v453, %v452
        %470 = vmatpush.bf16.msra.mxu0 %v461
        %471 = vmatpush.bf16.msra.mxu0 %v460
        %472 = vmatpush.bf16.msra.mxu0 %v459
        %473 = vmatpush.bf16.msra.mxu0 %v458
        %474 = vmatpush.bf16.msra.mxu0 %v457
        %475 = vmatpush.bf16.msra.mxu0 %v456
        %476 = vmatpush.bf16.msra.mxu0 %v455
        %477 = vmatpush.bf16.msra.mxu0 %v454
        %478 = vmatmul.bf16.gmra.mxu0 %v406
        %v479 = vpop.f32.mrf.mxu0
        %v480 = vadd.f32 %v372, %v479
        %v481 = vpop.f32.mrf.mxu0
        %482 = vmatmul.bf16.gmra.mxu0 %v407
        %v483 = vpop.f32.mrf.mxu0
        %v484 = vadd.f32 %v372, %v483
        %v485 = vpop.f32.mrf.mxu0
        %486 = vmatmul.bf16.gmra.mxu0 %v408
        %v487 = vpop.f32.mrf.mxu0
        %v488 = vadd.f32 %v372, %v487
        %v489 = vpop.f32.mrf.mxu0
        %490 = vmatmul.bf16.gmra.mxu0 %v409
        %v491 = vpop.f32.mrf.mxu0
        %v492 = vadd.f32 %v372, %v491
        %v493 = vpop.f32.mrf.mxu0
        %494 = vmatmul.bf16.gmra.mxu0 %v410
        %v495 = vpop.f32.mrf.mxu0
        %v496 = vadd.f32 %v372, %v495
        %v497 = vpop.f32.mrf.mxu0
        %498 = vmatmul.bf16.gmra.mxu0 %v411
        %v499 = vpop.f32.mrf.mxu0
        %v500 = vadd.f32 %v372, %v499
        %v501 = vpop.f32.mrf.mxu0
        %502 = vmatmul.bf16.gmra.mxu0 %v412
        %v503 = vpop.f32.mrf.mxu0
        %v504 = vadd.f32 %v372, %v503
        %v505 = vpop.f32.mrf.mxu0
        %506 = vmatmul.bf16.gmra.mxu0 %v413
        %v507 = vpop.f32.mrf.mxu0
        %v508 = vadd.f32 %v372, %v507
        %v509 = vpop.f32.mrf.mxu0
        %510 = vdwg.mxu0
        %s511 = smul.u32 0, 8
        %s512 = scalar_lea.vmem %s258, %s511 [#allocation2]
        %513 = vst [vmem:[%s512] sm:$0xff] %v480
        %514 = vst [vmem:[%s512 + $0x8] sm:$0xff] %v484
        %515 = vst [vmem:[%s512 + $0x10] sm:$0xff] %v488
        %516 = vst [vmem:[%s512 + $0x18] sm:$0xff] %v492
        %517 = vst [vmem:[%s512 + $0x20] sm:$0xff] %v496
        %518 = vst [vmem:[%s512 + $0x28] sm:$0xff] %v500
        %519 = vst [vmem:[%s512 + $0x30] sm:$0xff] %v504
        %520 = vst [vmem:[%s512 + $0x38] sm:$0xff] %v508
        %s521 = sand.u32 %s155, 1
        %s522 = scalar_lea.sflag [#allocation3], %s521
        %s523 = sand.u32 %s155, 1
        %s524 = smul.addr %s523, 64
        %s525 = scalar_lea.vmem [#allocation2], %s524
        // Predicated region
        $region37: #{transducer_joint.5} parent=35 // pred_check
          %p526 = pneg %p165
        $region38: #{transducer_joint.5} parent=35 // pred_check_branch
          %528 = sbr.rel (%p526) target = $region40
        $region39: #{transducer_joint.5} parent=35 // pred_region
          %s529 = smul.u32 8, %s24
          %531 = vsyncadd %s522, 0
          %s532 = sadd.s32 %s25, %s529
          %s533 = smul.addr %s23, 8
          %s534 = sadd.s32 %s532, %s533
          %s535 = smul.addr %s534, 8
          %s536 = scalar_lea.hbm %s4, %s535
          %s537 = sshll.u32 %s525, 4
          %s538 = int_to_ptr.vmem [resolvable:$true] %s537
          %s539 = sshll.u32 %s536, 4
          %s540 = int_to_ptr.hbm [resolvable:$true] %s539
          %545 = dma.vmem_to_hbm [thread:$0]  %s538, 1024, %s540, %s522, 128, 128, 8
        $region40: #{transducer_joint.5} parent=35 // pred_fallthru
          _
      $region36: #{transducer_joint.5} parent=5 // pred_fallthru
        _
      %p546 = scmp.le.s32.totalorder 2, %s13
      // Predicated region
      $region41: #{transducer_joint.5} parent=5 // pred_check
        %p547 = pneg %p546
      $region42: #{transducer_joint.5} parent=5 // pred_check_branch
        %549 = sbr.rel (%p547) target = $region44
      $region43: #{transducer_joint.5} parent=5 // pred_region
        %s550 = ssub.s32 %s13, 2
        // Predicated region
        $region45: #{transducer_joint.5} parent=43 // pred_check
          %p551 = pneg %p171
        $region46: #{transducer_joint.5} parent=43 // pred_check_branch
          %553 = sbr.rel (%p551) target = $region48
        $region47: #{transducer_joint.5} parent=43 // pred_region
          %s554 = sand.u32 %s156, 1
          %s555 = scalar_lea.sflag [#allocation3], %s554
          %s556 = sand.u32 %s156, 1
          %s557 = smul.addr %s556, 64
          %s558 = scalar_lea.vmem [#allocation2], %s557
          %560 = dma.done %s555, 1024
        $region48: #{transducer_joint.5} parent=43 // pred_fallthru
          _
      $region44: #{transducer_joint.5} parent=5 // pred_fallthru
        _
    $region6: #{transducer_joint.5} parent=1 // loop_footer
      %s17 = sadd.s32 1, %s13
    $region7: #{transducer_joint.5} parent=1 // loop_footer_branch
      %12 = sbr.rel target = $region3
    $region8: #{transducer_joint.5} parent=1 // loop_exit
      _
    %561 = vsyncpa [#allocation3], 1
    %s562 = scalar_lea.sflag [#allocation3], 1
    %563 = vsyncpa %s562, 1

</llo_original>
